<compile_context>
chip_gen: v5e
topology: v5e:2x2
jax: 0.10.0
libtpu: 0.0.40
codegen_flags: <defaults>
</compile_context>

<pallas_src>
import functools
import numpy as np

import jax
import jax.numpy as jnp
from jax.experimental import pallas as pl
from jax.experimental.pallas import tpu as pltpu


# ----------------------------- Pallas kernel ------------------------------ #
def _local_up_kernel(c1p_ref, w1_ref, b1_ref, w2_ref, b2_ref,
                     ahb_ref, bw_ref, c2_ref, out_ref,
                     *, NB, H, W, Cin, Cout, H2, W2):
    # c1p_ref: (NB, H+2, (W+2)*Cin) bf16  zero-padded, lane-flattened c1
    # w1_ref : (3, (W+2)*Cin, W*Cin) bf16 banded 3x3 taps per dy, BN1 scale folded
    # b1_ref : (1, W*Cin)            f32  BN1 bias tiled across W
    # w2_ref : (W*Cin, W*Cout)       bf16 block-diag kron(I_W, w2), BN2 scale folded
    # b2_ref : (1, W*Cout)           f32  BN2 bias tiled across W
    # ahb_ref: (NB*H, NB*H2)         bf16 kron(I_NB, A_h) row-interp matrix
    # bw_ref : (W2*Cout, W*Cout)     bf16 kron(A_w^T, I_Cout) col-interp matrix
    # c2_ref : (NB, H2, W2*Cout)     bf16 lane-flattened low-res feature map
    # out_ref: (NB, H, W*Cout)       f32  lane-dense output
    Wp = (W + 2) * Cin

    # --- 3x3 conv (BN1 scale folded): three sublane-offset bf16 row slabs,
    #     each hit with a banded lane-dense weight matrix; f32 accumulate ---
    acc = None
    for dy in range(3):
        slab = c1p_ref[:, pl.ds(dy, H), :].reshape(NB * H, Wp)        # bf16
        part = jnp.dot(slab, w1_ref[dy], preferred_element_type=jnp.float32)
        acc = part if acc is None else acc + part
    y = jnp.maximum(acc + b1_ref[...], 0.0)                           # (NB*H, W*Cin)

    # --- 1x1 conv (BN2 scale folded) in lane-flattened space: kron(I_W, w2) ---
    z = jnp.dot(y.astype(jnp.bfloat16), w2_ref[...],
                preferred_element_type=jnp.float32)
    z = jnp.maximum(z + b2_ref[...], 0.0)                             # (NB*H, W*Cout)

    # --- separable bilinear upsample (align_corners=True): two 2D matmuls ---
    c2 = c2_ref[...].reshape(NB * H2, W2 * Cout)                      # bf16
    t = jnp.dot(ahb_ref[...], c2, preferred_element_type=jnp.float32)
    up = jnp.dot(t.astype(jnp.bfloat16), bw_ref[...],
                 preferred_element_type=jnp.float32)                  # (NB*H, W*Cout)

    # --- residual add; lane-dense store ---
    out_ref[...] = (z + up).reshape(NB, H, W * Cout).astype(out_ref.dtype)


# ------------------------------ glue / wrapper ----------------------------- #
def _interp_matrix_align_corners(out_size, in_size):
    """Row-stochastic matrix M (out_size, in_size): y = M @ x is 1-D linear
    interpolation with PyTorch align_corners=True semantics."""
    M = np.zeros((out_size, in_size), np.float32)
    if out_size == 1 or in_size == 1:
        M[:, 0] = 1.0
        return M
    coords = np.arange(out_size, dtype=np.float64) * (in_size - 1) / (out_size - 1)
    lo = np.clip(np.floor(coords).astype(np.int64), 0, in_size - 1)
    hi = np.minimum(lo + 1, in_size - 1)
    frac = (coords - lo).astype(np.float32)
    M[np.arange(out_size), lo] += 1.0 - frac
    M[np.arange(out_size), hi] += frac
    return M


def _fold_bn(gamma, beta, mean, var, eps=1e-5):
    scale = gamma / jnp.sqrt(var + eps)
    return scale, beta - mean * scale


def _pick_batch_block(N, H, W, Cin, Cout, H2, W2, budget_bytes=24 * 1024 * 1024):
    """Largest batch block whose double-buffered slabs + live f32 intermediates
    stay well under the per-generation VMEM budget (conservative for v7x)."""
    per_img = (2 * ((H + 2) * (W + 2) * Cin * 2 + H2 * W2 * Cout * 2
                    + H * W * Cout * 4)
               + 4 * H * W * (Cin + 3 * Cout))
    nb = int(max(1, min(N, budget_bytes // max(per_img, 1))))
    while N % nb:
        nb -= 1
    return nb


def local_up_forward(c1_nchw, c2_nchw, params, *, nb=None):
    """Forward pass of localUp.  Inputs/outputs are NCHW like PyTorch."""
    N, Cin, H, W = c1_nchw.shape
    N2, Cout, H2, W2 = c2_nchw.shape
    assert N == N2

    if nb is None:
        nb = _pick_batch_block(N, H, W, Cin, Cout, H2, W2)
    assert N % nb == 0
    Wp = (W + 2) * Cin

    # fold eval-mode BatchNorm into per-channel scale/bias
    s1, b1 = _fold_bn(params["bn1_gamma"], params["bn1_beta"],
                      params["bn1_mean"], params["bn1_var"])
    s2, b2 = _fold_bn(params["bn2_gamma"], params["bn2_beta"],
                      params["bn2_mean"], params["bn2_var"])

    # 3x3 conv: (O,I,kh,kw) -> (kh,kw,I,O), BN1 scale folded, dx folded into a
    # banded ((W+2)*Cin, W*Cin) matrix per dy tap row.
    w1_hwio = jnp.transpose(params["conv1_w"], (2, 3, 1, 0)) * s1[None, None, None, :]
    S = np.zeros((3, W + 2, W), np.float32)
    for dx in range(3):
        S[dx, dx + np.arange(W), np.arange(W)] = 1.0
    w1b = jnp.einsum("xpw,yxio->ypiwo", jnp.asarray(S), w1_hwio)
    w1b = w1b.reshape(3, Wp, W * Cin).astype(jnp.bfloat16)

    # 1x1 conv: block-diagonal kron(I_W, w2), BN2 scale folded
    w2 = jnp.transpose(params["conv2_w"][:, :, 0, 0], (1, 0)) * s2[None, :]
    w2b = jnp.kron(jnp.eye(W, dtype=jnp.float32), w2).astype(jnp.bfloat16)

    # biases tiled into the lane-flattened layout
    b1t = jnp.tile(b1, W).reshape(1, W * Cin).astype(jnp.float32)
    b2t = jnp.tile(b2, W).reshape(1, W * Cout).astype(jnp.float32)

    # interpolation matrices (align_corners=True) in lane-dense kron'd form
    A_h = _interp_matrix_align_corners(H, H2)                          # (H, H2)
    A_w = _interp_matrix_align_corners(W, W2)                          # (W, W2)
    ahb = jnp.asarray(np.kron(np.eye(nb, dtype=np.float32), A_h),
                      dtype=jnp.bfloat16)                              # (nb*H, nb*H2)
    bw = jnp.asarray(np.kron(A_w.T, np.eye(Cout, dtype=np.float32)),
                     dtype=jnp.bfloat16)                               # (W2*Cout, W*Cout)

    # activations: cast to bf16 BEFORE the transpose/pad HBM pass, lane-flatten
    c1p = jnp.pad(jnp.transpose(c1_nchw.astype(jnp.bfloat16), (0, 2, 3, 1)),
                  ((0, 0), (1, 1), (1, 1), (0, 0))).reshape(N, H + 2, Wp)
    c2f = jnp.transpose(c2_nchw.astype(jnp.bfloat16),
                        (0, 2, 3, 1)).reshape(N, H2, W2 * Cout)

    # TODO(synk): for large H*W add a row-block grid axis (1-pixel halo via
    # overlapping index_map rows) so per-step VMEM stays under v7x's 64 MiB and
    # both v7x TensorCores get work even at N==1; unnecessary at these sizes.

    kern = functools.partial(_local_up_kernel, NB=nb, H=H, W=W, Cin=Cin,
                             Cout=Cout, H2=H2, W2=W2)
    out_flat = pl.pallas_call(
        kern,
        out_shape=jax.ShapeDtypeStruct((N, H, W * Cout), jnp.float32),
        grid_spec=pltpu.PrefetchScalarGridSpec(
            num_scalar_prefetch=0,
            grid=(N // nb,),
            in_specs=[
                pl.BlockSpec((nb, H + 2, Wp), lambda n: (n, 0, 0)),
                pl.BlockSpec((3, Wp, W * Cin), lambda n: (0, 0, 0)),
                pl.BlockSpec((1, W * Cin), lambda n: (0, 0)),
                pl.BlockSpec((W * Cin, W * Cout), lambda n: (0, 0)),
                pl.BlockSpec((1, W * Cout), lambda n: (0, 0)),
                pl.BlockSpec((nb * H, nb * H2), lambda n: (0, 0)),
                pl.BlockSpec((W2 * Cout, W * Cout), lambda n: (0, 0)),
                pl.BlockSpec((nb, H2, W2 * Cout), lambda n: (n, 0, 0)),
            ],
            out_specs=pl.BlockSpec((nb, H, W * Cout), lambda n: (n, 0, 0)),
        ),
        compiler_params=pltpu.CompilerParams(
            dimension_semantics=("parallel",),
            # 48 MiB fits every generation (v7x has only 64 MiB physical VMEM);
            # raise toward 96 MiB on v6e/v5e if using much larger row/batch tiles.
            vmem_limit_bytes=48 * 1024 * 1024),
    )(c1p, w1b, b1t, w2b, b2t, ahb, bw, c2f)

    # lane-dense flat output -> NCHW (single wrapper transpose, matches PyTorch)
    out = out_flat.reshape(N, H, W, Cout)
    return jnp.transpose(out, (0, 3, 1, 2))


# ------------------------------ reference --------------------------------- #
def local_up_reference(c1_nchw, c2_nchw, params):
    """Pure-JAX (XLA, f32) reference with identical semantics, for verification."""
    N, Cin, H, W = c1_nchw.shape
    _, Cout, H2, W2 = c2_nchw.shape
    c1 = jnp.transpose(c1_nchw, (0, 2, 3, 1)).astype(jnp.float32)
    c2 = jnp.transpose(c2_nchw, (0, 2, 3, 1)).astype(jnp.float32)

    s1, b1 = _fold_bn(params["bn1_gamma"], params["bn1_beta"],
                      params["bn1_mean"], params["bn1_var"])
    s2, b2 = _fold_bn(params["bn2_gamma"], params["bn2_beta"],
                      params["bn2_mean"], params["bn2_var"])

    w1_hwio = jnp.transpose(params["conv1_w"], (2, 3, 1, 0))
    y = jax.lax.conv_general_dilated(
        c1, w1_hwio, window_strides=(1, 1), padding="SAME",
        dimension_numbers=("NHWC", "HWIO", "NHWC"))
    y = jnp.maximum(y * s1 + b1, 0.0)
    w2 = jnp.transpose(params["conv2_w"][:, :, 0, 0], (1, 0))
    z = jnp.einsum("nhwi,io->nhwo", y, w2)
    z = jnp.maximum(z * s2 + b2, 0.0)

    A_h = jnp.asarray(_interp_matrix_align_corners(H, H2))
    A_w = jnp.asarray(_interp_matrix_align_corners(W, W2))
    up = jnp.einsum("hp,wq,npqc->nhwc", A_h, A_w, c2)

    return jnp.transpose(z + up, (0, 3, 1, 2))


# --------------------------- deterministic params -------------------------- #
def init_params(key, in_channels, out_channels):
    ks = jax.random.split(key, 6)
    return {
        "conv1_w": 0.1 * jax.random.normal(ks[0], (in_channels, in_channels, 3, 3), jnp.float32),
        "conv2_w": 0.1 * jax.random.normal(ks[1], (out_channels, in_channels, 1, 1), jnp.float32),
        "bn1_gamma": 1.0 + 0.1 * jax.random.normal(ks[2], (in_channels,), jnp.float32),
        "bn1_beta": 0.1 * jax.random.normal(ks[3], (in_channels,), jnp.float32),
        "bn1_mean": jnp.zeros((in_channels,), jnp.float32),
        "bn1_var": jnp.ones((in_channels,), jnp.float32),
        "bn2_gamma": 1.0 + 0.1 * jax.random.normal(ks[4], (out_channels,), jnp.float32),
        "bn2_beta": 0.1 * jax.random.normal(ks[5], (out_channels,), jnp.float32),
        "bn2_mean": jnp.zeros((out_channels,), jnp.float32),
        "bn2_var": jnp.ones((out_channels,), jnp.float32),
    }


if __name__ == "__main__":
    N, Cin, Cout = 2, 8, 16
    H, W = 16, 16          # c1 spatial
    H2, W2 = 8, 8          # c2 spatial (upsampled to (H, W))

    key = jax.random.PRNGKey(0)
    k_c1, k_c2, k_p = jax.random.split(key, 3)
    c1 = jax.random.normal(k_c1, (N, Cin, H, W), jnp.float32)     # NCHW like PyTorch
    c2 = jax.random.normal(k_c2, (N, Cout, H2, W2), jnp.float32)  # NCHW like PyTorch
    params = init_params(k_p, Cin, Cout)

    out = jax.block_until_ready(local_up_forward(c1, c2, params))
    ref = jax.block_until_ready(local_up_reference(c1, c2, params))
    assert out.shape == (N, Cout, H, W)
    # bf16 MXU inputs on both the conv and interp paths (f32 accumulation)
    # vs. an all-f32 reference -> slightly looser tolerance.
    np.testing.assert_allclose(np.asarray(out), np.asarray(ref), rtol=2e-2, atol=3e-2)

    print("KERNEL_OK")
</pallas_src>

<mosaic_0001>
module attributes {stable_mosaic.version = 11 : i64} {
  func.func @_local_up_kernel(%arg0: i32, %arg1: memref<2x18x144xbf16, #tpu.memory_space<vmem>>, %arg2: memref<3x144x128xbf16, #tpu.memory_space<vmem>>, %arg3: memref<1x128xf32, #tpu.memory_space<vmem>>, %arg4: memref<128x256xbf16, #tpu.memory_space<vmem>>, %arg5: memref<1x256xf32, #tpu.memory_space<vmem>>, %arg6: memref<32x16xbf16, #tpu.memory_space<vmem>>, %arg7: memref<128x256xbf16, #tpu.memory_space<vmem>>, %arg8: memref<2x8x128xbf16, #tpu.memory_space<vmem>>, %arg9: memref<2x16x256xf32, #tpu.memory_space<vmem>>) attributes {dimension_semantics = [#tpu.dimension_semantics<parallel>], iteration_bounds = array<i64: 1>, scalar_prefetch = 0 : i64, scratch_operands = 0 : i64, tpu.core_type = #tpu.core_type<tc>, window_params = [{transform_indices = @transform_0, window_bounds = array<i64: 2, 18, 144>}, {pipeline_mode = #tpu.pipeline_mode<synchronous>, transform_indices = @transform_1, window_bounds = array<i64: 3, 144, 128>}, {pipeline_mode = #tpu.pipeline_mode<synchronous>, transform_indices = @transform_2, window_bounds = array<i64: 1, 128>}, {pipeline_mode = #tpu.pipeline_mode<synchronous>, transform_indices = @transform_3, window_bounds = array<i64: 128, 256>}, {pipeline_mode = #tpu.pipeline_mode<synchronous>, transform_indices = @transform_4, window_bounds = array<i64: 1, 256>}, {pipeline_mode = #tpu.pipeline_mode<synchronous>, transform_indices = @transform_5, window_bounds = array<i64: 32, 16>}, {pipeline_mode = #tpu.pipeline_mode<synchronous>, transform_indices = @transform_6, window_bounds = array<i64: 128, 256>}, {transform_indices = @transform_7, window_bounds = array<i64: 2, 8, 128>}, {transform_indices = @transform_8, window_bounds = array<i64: 2, 16, 256>}]} {
    %c0 = arith.constant 0 : index
    %c0_0 = arith.constant 0 : index
    %c0_1 = arith.constant 0 : index
    %0 = vector.load %arg1[%c0, %c0_0, %c0_1] : memref<2x18x144xbf16, #tpu.memory_space<vmem>>, vector<2x16x144xbf16>
    %1 = vector.shape_cast %0 : vector<2x16x144xbf16> to vector<32x144xbf16>
    %c0_2 = arith.constant 0 : index
    %c0_3 = arith.constant 0 : index
    %c0_4 = arith.constant 0 : index
    %2 = vector.load %arg2[%c0_2, %c0_3, %c0_4] : memref<3x144x128xbf16, #tpu.memory_space<vmem>>, vector<1x144x128xbf16>
    %3 = vector.shape_cast %2 : vector<1x144x128xbf16> to vector<144x128xbf16>
    %cst = arith.constant dense<0.000000e+00> : vector<32x128xf32>
    %4 = tpu.matmul %1, %3, %cst {dimension_numbers = #tpu.dot_dimension_numbers<[1], [0], [0], [1], [0, 0, 1, 1], [], []>} : vector<32x144xbf16>, vector<144x128xbf16>, vector<32x128xf32> -> vector<32x128xf32>
    %c0_5 = arith.constant 0 : index
    %c1 = arith.constant 1 : index
    %c0_6 = arith.constant 0 : index
    %5 = vector.load %arg1[%c0_5, %c1, %c0_6] : memref<2x18x144xbf16, #tpu.memory_space<vmem>>, vector<2x16x144xbf16>
    %6 = vector.shape_cast %5 : vector<2x16x144xbf16> to vector<32x144xbf16>
    %c1_7 = arith.constant 1 : index
    %c0_8 = arith.constant 0 : index
    %c0_9 = arith.constant 0 : index
    %7 = vector.load %arg2[%c1_7, %c0_8, %c0_9] : memref<3x144x128xbf16, #tpu.memory_space<vmem>>, vector<1x144x128xbf16>
    %8 = vector.shape_cast %7 : vector<1x144x128xbf16> to vector<144x128xbf16>
    %cst_10 = arith.constant dense<0.000000e+00> : vector<32x128xf32>
    %9 = tpu.matmul %6, %8, %cst_10 {dimension_numbers = #tpu.dot_dimension_numbers<[1], [0], [0], [1], [0, 0, 1, 1], [], []>} : vector<32x144xbf16>, vector<144x128xbf16>, vector<32x128xf32> -> vector<32x128xf32>
    %10 = arith.addf %4, %9 : vector<32x128xf32>
    %c0_11 = arith.constant 0 : index
    %c2 = arith.constant 2 : index
    %c0_12 = arith.constant 0 : index
    %11 = vector.load %arg1[%c0_11, %c2, %c0_12] : memref<2x18x144xbf16, #tpu.memory_space<vmem>>, vector<2x16x144xbf16>
    %12 = vector.shape_cast %11 : vector<2x16x144xbf16> to vector<32x144xbf16>
    %c2_13 = arith.constant 2 : index
    %c0_14 = arith.constant 0 : index
    %c0_15 = arith.constant 0 : index
    %13 = vector.load %arg2[%c2_13, %c0_14, %c0_15] : memref<3x144x128xbf16, #tpu.memory_space<vmem>>, vector<1x144x128xbf16>
    %14 = vector.shape_cast %13 : vector<1x144x128xbf16> to vector<144x128xbf16>
    %cst_16 = arith.constant dense<0.000000e+00> : vector<32x128xf32>
    %15 = tpu.matmul %12, %14, %cst_16 {dimension_numbers = #tpu.dot_dimension_numbers<[1], [0], [0], [1], [0, 0, 1, 1], [], []>} : vector<32x144xbf16>, vector<144x128xbf16>, vector<32x128xf32> -> vector<32x128xf32>
    %16 = arith.addf %10, %15 : vector<32x128xf32>
    %c0_17 = arith.constant 0 : index
    %c0_18 = arith.constant 0 : index
    %17 = vector.load %arg3[%c0_17, %c0_18] : memref<1x128xf32, #tpu.memory_space<vmem>>, vector<1x128xf32>
    %18 = vector.broadcast %17 : vector<1x128xf32> to vector<32x128xf32>
    %19 = arith.addf %16, %18 : vector<32x128xf32>
    %cst_19 = arith.constant 0.000000e+00 : f32
    %20 = vector.broadcast %cst_19 : f32 to vector<32x128xf32>
    %21 = arith.maximumf %19, %20 : vector<32x128xf32>
    %22 = arith.truncf %21 : vector<32x128xf32> to vector<32x128xbf16>
    %c0_20 = arith.constant 0 : index
    %c0_21 = arith.constant 0 : index
    %23 = vector.load %arg4[%c0_20, %c0_21] : memref<128x256xbf16, #tpu.memory_space<vmem>>, vector<128x256xbf16>
    %cst_22 = arith.constant dense<0.000000e+00> : vector<32x256xf32>
    %24 = tpu.matmul %22, %23, %cst_22 {dimension_numbers = #tpu.dot_dimension_numbers<[1], [0], [0], [1], [0, 0, 1, 1], [], []>} : vector<32x128xbf16>, vector<128x256xbf16>, vector<32x256xf32> -> vector<32x256xf32>
    %c0_23 = arith.constant 0 : index
    %c0_24 = arith.constant 0 : index
    %25 = vector.load %arg5[%c0_23, %c0_24] : memref<1x256xf32, #tpu.memory_space<vmem>>, vector<1x256xf32>
    %26 = vector.broadcast %25 : vector<1x256xf32> to vector<32x256xf32>
    %27 = arith.addf %24, %26 : vector<32x256xf32>
    %cst_25 = arith.constant 0.000000e+00 : f32
    %28 = vector.broadcast %cst_25 : f32 to vector<32x256xf32>
    %29 = arith.maximumf %27, %28 : vector<32x256xf32>
    %c0_26 = arith.constant 0 : index
    %c0_27 = arith.constant 0 : index
    %c0_28 = arith.constant 0 : index
    %30 = vector.load %arg8[%c0_26, %c0_27, %c0_28] : memref<2x8x128xbf16, #tpu.memory_space<vmem>>, vector<2x8x128xbf16>
    %31 = vector.shape_cast %30 : vector<2x8x128xbf16> to vector<16x128xbf16>
    %c0_29 = arith.constant 0 : index
    %c0_30 = arith.constant 0 : index
    %32 = vector.load %arg6[%c0_29, %c0_30] : memref<32x16xbf16, #tpu.memory_space<vmem>>, vector<32x16xbf16>
    %cst_31 = arith.constant dense<0.000000e+00> : vector<32x128xf32>
    %33 = tpu.matmul %32, %31, %cst_31 {dimension_numbers = #tpu.dot_dimension_numbers<[1], [0], [0], [1], [0, 0, 1, 1], [], []>} : vector<32x16xbf16>, vector<16x128xbf16>, vector<32x128xf32> -> vector<32x128xf32>
    %34 = arith.truncf %33 : vector<32x128xf32> to vector<32x128xbf16>
    %c0_32 = arith.constant 0 : index
    %c0_33 = arith.constant 0 : index
    %35 = vector.load %arg7[%c0_32, %c0_33] : memref<128x256xbf16, #tpu.memory_space<vmem>>, vector<128x256xbf16>
    %cst_34 = arith.constant dense<0.000000e+00> : vector<32x256xf32>
    %36 = tpu.matmul %34, %35, %cst_34 {dimension_numbers = #tpu.dot_dimension_numbers<[1], [0], [0], [1], [0, 0, 1, 1], [], []>} : vector<32x128xbf16>, vector<128x256xbf16>, vector<32x256xf32> -> vector<32x256xf32>
    %37 = arith.addf %29, %36 : vector<32x256xf32>
    %38 = vector.shape_cast %37 : vector<32x256xf32> to vector<2x16x256xf32>
    %c0_35 = arith.constant 0 : index
    %c0_36 = arith.constant 0 : index
    %c0_37 = arith.constant 0 : index
    %39 = vector.load %arg9[%c0_35, %c0_36, %c0_37] : memref<2x16x256xf32, #tpu.memory_space<vmem>>, vector<2x16x256xf32>
    tpu.vector_store %arg9[%c0_35, %c0_36, %c0_37], %38 {strides = array<i32>} : memref<2x16x256xf32, #tpu.memory_space<vmem>>, vector<2x16x256xf32>,
    return
  }
  func.func @transform_0(%arg0: i32) -> (i32, i32, i32) {
    %c0_i32 = arith.constant 0 : i32
    %c0_i32_0 = arith.constant 0 : i32
    %c0_i32_1 = arith.constant 0 : i32
    return %arg0, %c0_i32, %c0_i32_0 : i32, i32, i32
  }
  func.func @transform_1(%arg0: i32) -> (i32, i32, i32) {
    %c0_i32 = arith.constant 0 : i32
    %c0_i32_0 = arith.constant 0 : i32
    %c0_i32_1 = arith.constant 0 : i32
    %c0_i32_2 = arith.constant 0 : i32
    return %c0_i32, %c0_i32_0, %c0_i32_1 : i32, i32, i32
  }
  func.func @transform_2(%arg0: i32) -> (i32, i32) {
    %c0_i32 = arith.constant 0 : i32
    %c0_i32_0 = arith.constant 0 : i32
    %c0_i32_1 = arith.constant 0 : i32
    return %c0_i32, %c0_i32_0 : i32, i32
  }
  func.func @transform_3(%arg0: i32) -> (i32, i32) {
    %c0_i32 = arith.constant 0 : i32
    %c0_i32_0 = arith.constant 0 : i32
    %c0_i32_1 = arith.constant 0 : i32
    return %c0_i32, %c0_i32_0 : i32, i32
  }
  func.func @transform_4(%arg0: i32) -> (i32, i32) {
    %c0_i32 = arith.constant 0 : i32
    %c0_i32_0 = arith.constant 0 : i32
    %c0_i32_1 = arith.constant 0 : i32
    return %c0_i32, %c0_i32_0 : i32, i32
  }
  func.func @transform_5(%arg0: i32) -> (i32, i32) {
    %c0_i32 = arith.constant 0 : i32
    %c0_i32_0 = arith.constant 0 : i32
    %c0_i32_1 = arith.constant 0 : i32
    return %c0_i32, %c0_i32_0 : i32, i32
  }
  func.func @transform_6(%arg0: i32) -> (i32, i32) {
    %c0_i32 = arith.constant 0 : i32
    %c0_i32_0 = arith.constant 0 : i32
    %c0_i32_1 = arith.constant 0 : i32
    return %c0_i32, %c0_i32_0 : i32, i32
  }
  func.func @transform_7(%arg0: i32) -> (i32, i32, i32) {
    %c0_i32 = arith.constant 0 : i32
    %c0_i32_0 = arith.constant 0 : i32
    %c0_i32_1 = arith.constant 0 : i32
    return %arg0, %c0_i32, %c0_i32_0 : i32, i32, i32
  }
  func.func @transform_8(%arg0: i32) -> (i32, i32, i32) {
    %c0_i32 = arith.constant 0 : i32
    %c0_i32_0 = arith.constant 0 : i32
    %c0_i32_1 = arith.constant 0 : i32
    return %arg0, %c0_i32, %c0_i32_0 : i32, i32, i32
  }
}

</mosaic_0001>

<llo_original>
// kernel: tpu_custom_call.1
$region0: #{tpu_custom_call.1}
  #allocation0 [shape = 'u32[]', space=smem, size = 0x4, offset = 0x4, fixed_abs, tag = 'smem constant byte address 0x4 - core index']
  #allocation1 [shape = 'u32[72,128]{1,0:T(1,128)}', space=vmem, size = 0x9000, scoped, tag = 'internal scratch']
  %s0 = inlined_call_operand.vmem [shape: bf16[2,18,144], index: 0, kind: input, shape index: {}]
  %s1 = inlined_call_operand.hbm [shape: bf16[3,144,128], index: 1, kind: input, shape index: {}]
  %s2 = inlined_call_operand.vmem [shape: f32[1,128], index: 2, kind: input, shape index: {}]
  %s3 = inlined_call_operand.hbm [shape: bf16[128,256], index: 3, kind: input, shape index: {}]
  %s4 = inlined_call_operand.vmem [shape: f32[1,256], index: 4, kind: input, shape index: {}]
  %s5 = inlined_call_operand.vmem [shape: bf16[32,16], index: 5, kind: input, shape index: {}]
  %s6 = inlined_call_operand.hbm [shape: bf16[128,256], index: 6, kind: input, shape index: {}]
  %s7 = inlined_call_operand.vmem [shape: bf16[2,8,128], index: 7, kind: input, shape index: {}]
  %s8 = inlined_call_operand.hbm [shape: f32[2,16,256], index: 8, kind: output, shape index: {}]
  %s9 = sld [smem:[#allocation0]]
  $region54: #{tpu_custom_call.1} parent=0
    _
  %s11 = ssub.s32 1, %s9
  %s12 = scalar_select 0, %s11, %s9
  $region1: #{tpu_custom_call.1} parent=0
    #allocation2 [shape = 'u8[110592]{0}', space=vmem, size = 0x1b000, scoped, tag = 'input window, operand 1, single buffered']
    #allocation3 [shape = 's32[1]{0}', space=sflag, size = 0x4, scoped, tag = 'scoped memory for tpu_custom_call.1']
    #allocation4 [shape = 's32[1]{0}', space=sflag, size = 0x4, scoped, tag = 'scoped memory for tpu_custom_call.1']
    #allocation5 [shape = 'u8[65536]{0}', space=vmem, size = 0x10000, scoped, tag = 'input window, operand 3, single buffered']
    #allocation6 [shape = 's32[1]{0}', space=sflag, size = 0x4, scoped, tag = 'scoped memory for tpu_custom_call.1']
    #allocation7 [shape = 'u8[65536]{0}', space=vmem, size = 0x10000, scoped, tag = 'input window, operand 6, single buffered']
    #allocation8 [shape = 'u8[32768]{0}', space=vmem, size = 0x8000, scoped, tag = 'output window, operand 0, single buffered']
    %13 = vsyncpa [#allocation3], 0
    %14 = vsyncpa [#allocation6], 0
    %15 = vsyncpa [#allocation4], 0
    // Predicated region
    $region2: #{tpu_custom_call.1} parent=1 // pred_check
      _
    $region3: #{tpu_custom_call.1} parent=1 // pred_check_branch
      %17 = sbr.rel (0) target = $region5
    $region4: #{tpu_custom_call.1} parent=1 // pred_region
      _
    $region5: #{tpu_custom_call.1} parent=1 // pred_fallthru
      _
    // Predicated region
    $region6: #{tpu_custom_call.1} parent=1 // pred_check
      _
    $region7: #{tpu_custom_call.1} parent=1 // pred_check_branch
      %19 = sbr.rel (0) target = $region9
    $region8: #{tpu_custom_call.1} parent=1 // pred_region
      %21 = vsyncadd [#allocation3], 0
      %s22 = sshll.u32 %s1, 4
      %s23 = int_to_ptr.hbm [resolvable:$true] %s22
      %s24 = sshll.u32 [#allocation2], 4
      %s25 = int_to_ptr.vmem [resolvable:$true] %s24
      %30 = dma.hbm_to_vmem [thread:$0]  %s23, 3456, %s25, [#allocation3], 64, 64, 4
    $region9: #{tpu_custom_call.1} parent=1 // pred_fallthru
      _
    // Predicated region
    $region10: #{tpu_custom_call.1} parent=1 // pred_check
      _
    $region11: #{tpu_custom_call.1} parent=1 // pred_check_branch
      %32 = sbr.rel (0) target = $region13
    $region12: #{tpu_custom_call.1} parent=1 // pred_region
      _
    $region13: #{tpu_custom_call.1} parent=1 // pred_fallthru
      _
    // Predicated region
    $region14: #{tpu_custom_call.1} parent=1 // pred_check
      _
    $region15: #{tpu_custom_call.1} parent=1 // pred_check_branch
      %34 = sbr.rel (0) target = $region17
    $region16: #{tpu_custom_call.1} parent=1 // pred_region
      %36 = vsyncadd [#allocation6], 0
      %s37 = sshll.u32 %s3, 4
      %s38 = int_to_ptr.hbm [resolvable:$true] %s37
      %s39 = sshll.u32 [#allocation5], 4
      %s40 = int_to_ptr.vmem [resolvable:$true] %s39
      %45 = dma.hbm_to_vmem [thread:$0]  %s38, 2048, %s40, [#allocation6], 128, 128, 8
    $region17: #{tpu_custom_call.1} parent=1 // pred_fallthru
      _
    // Predicated region
    $region18: #{tpu_custom_call.1} parent=1 // pred_check
      _
    $region19: #{tpu_custom_call.1} parent=1 // pred_check_branch
      %47 = sbr.rel (0) target = $region21
    $region20: #{tpu_custom_call.1} parent=1 // pred_region
      _
    $region21: #{tpu_custom_call.1} parent=1 // pred_fallthru
      _
    // Predicated region
    $region22: #{tpu_custom_call.1} parent=1 // pred_check
      _
    $region23: #{tpu_custom_call.1} parent=1 // pred_check_branch
      %49 = sbr.rel (0) target = $region25
    $region24: #{tpu_custom_call.1} parent=1 // pred_region
      _
    $region25: #{tpu_custom_call.1} parent=1 // pred_fallthru
      _
    // Predicated region
    $region26: #{tpu_custom_call.1} parent=1 // pred_check
      _
    $region27: #{tpu_custom_call.1} parent=1 // pred_check_branch
      %51 = sbr.rel (0) target = $region29
    $region28: #{tpu_custom_call.1} parent=1 // pred_region
      %53 = vsyncadd [#allocation6], 0
      %s54 = sshll.u32 %s6, 4
      %s55 = int_to_ptr.hbm [resolvable:$true] %s54
      %s56 = sshll.u32 [#allocation7], 4
      %s57 = int_to_ptr.vmem [resolvable:$true] %s56
      %62 = dma.hbm_to_vmem [thread:$0]  %s55, 2048, %s57, [#allocation6], 128, 128, 8
    $region29: #{tpu_custom_call.1} parent=1 // pred_fallthru
      _
    // Predicated region
    $region30: #{tpu_custom_call.1} parent=1 // pred_check
      _
    $region31: #{tpu_custom_call.1} parent=1 // pred_check_branch
      %64 = sbr.rel (0) target = $region33
    $region32: #{tpu_custom_call.1} parent=1 // pred_region
      _
    $region33: #{tpu_custom_call.1} parent=1 // pred_fallthru
      _
    // Predicated region
    $region34: #{tpu_custom_call.1} parent=1 // pred_check
      _
    $region35: #{tpu_custom_call.1} parent=1 // pred_check_branch
      %66 = sbr.rel (0) target = $region37
    $region36: #{tpu_custom_call.1} parent=1 // pred_region
      %68 = dma.done [#allocation3], 3456
    $region37: #{tpu_custom_call.1} parent=1 // pred_fallthru
      _
    // Predicated region
    $region38: #{tpu_custom_call.1} parent=1 // pred_check
      _
    $region39: #{tpu_custom_call.1} parent=1 // pred_check_branch
      %70 = sbr.rel (0) target = $region41
    $region40: #{tpu_custom_call.1} parent=1 // pred_region
      %72 = dma.done [#allocation6], 2048
    $region41: #{tpu_custom_call.1} parent=1 // pred_fallthru
      _
    // Predicated region
    $region42: #{tpu_custom_call.1} parent=1 // pred_check
      _
    $region43: #{tpu_custom_call.1} parent=1 // pred_check_branch
      %74 = sbr.rel (0) target = $region45
    $region44: #{tpu_custom_call.1} parent=1 // pred_region
      %76 = dma.done [#allocation6], 2048
    $region45: #{tpu_custom_call.1} parent=1 // pred_fallthru
      _
    %v78 = vld [vmem:[%s0] sm:$0xff]
    %v79 = vld [vmem:[%s0 + $0x8] sm:$0xff]
    %v80 = vld [vmem:[%s0 + $0x18] sm:$0xff]
    %v81 = vld [vmem:[%s0 + $0x20] sm:$0xff]
    %v82 = vld [vmem:[#allocation2] sm:$0xf]
    %v83 = vld [vmem:[#allocation2 + $0x4] sm:$0xf]
    %v84 = vld [vmem:[#allocation2 + $0x8] sm:$0xf]
    %v85 = vld [vmem:[#allocation2 + $0xc] sm:$0xf]
    %v86 = vld [vmem:[#allocation2 + $0x10] sm:$0xf]
    %v87 = vld [vmem:[#allocation2 + $0x14] sm:$0xf]
    %v88 = vld [vmem:[#allocation2 + $0x18] sm:$0xf]
    %v89 = vld [vmem:[#allocation2 + $0x1c] sm:$0xf]
    %v90 = vld [vmem:[#allocation2 + $0x20] sm:$0xf]
    %v91 = vld [vmem:[#allocation2 + $0x24] sm:$0xf]
    %v92 = vld [vmem:[#allocation2 + $0x28] sm:$0xf]
    %v93 = vld [vmem:[#allocation2 + $0x2c] sm:$0xf]
    %v94 = vld [vmem:[#allocation2 + $0x30] sm:$0xf]
    %v95 = vld [vmem:[#allocation2 + $0x34] sm:$0xf]
    %v96 = vld [vmem:[#allocation2 + $0x38] sm:$0xf]
    %v97 = vld [vmem:[#allocation2 + $0x3c] sm:$0xf]
    %v98 = vld [vmem:[#allocation2 + $0x40] sm:$0xf]
    %v99 = vld [vmem:[#allocation2 + $0x44] sm:$0xf]
    %v100 = vld [vmem:[%s0 + $0x10] sm:$0x11]
    %v101 = vld [vmem:[%s0 + $0x28] sm:$0x11]
    %vm102 = vsmask.f32 3328
    %vm103 = vsmask.f32 7440
    %vm104 = vmor %vm102, %vm103
    %v106 = vshrl.u32 %v78, 16
    %v108 = vrot.slane %v106, 4
    %v109 = vshll.u32 %v78, 16
    %v111 = vrot.slane %v109, 5
    %v112 = vor.u32 %v108, %v111
    %v113 = vrot.slane %v112, 4
    %v115 = vshll.u32 %v79, 16
    %v117 = vrot.slane %v115, 5
    %v118 = vsel %vm104, %v113, %v117
    %v119 = vshrl.u32 %v79, 16
    %v121 = vrot.slane %v119, 4
    %v122 = vor.u32 %v121, %v117
    %v123 = vrot.slane %v122, 4
    %v125 = vshll.u32 %v100, 16
    %v127 = vrot.slane %v125, 5
    %v128 = vsel %vm104, %v123, %v127
    %v130 = vshrl.u32 %v80, 16
    %v132 = vrot.slane %v130, 4
    %v133 = vshll.u32 %v80, 16
    %v135 = vrot.slane %v133, 5
    %v136 = vor.u32 %v132, %v135
    %v137 = vrot.slane %v136, 4
    %v139 = vshll.u32 %v81, 16
    %v141 = vrot.slane %v139, 5
    %v142 = vsel %vm104, %v137, %v141
    %v143 = vshrl.u32 %v81, 16
    %v145 = vrot.slane %v143, 4
    %v146 = vor.u32 %v145, %v141
    %v147 = vrot.slane %v146, 4
    %v149 = vshll.u32 %v101, 16
    %v151 = vrot.slane %v149, 5
    %v152 = vsel %vm104, %v147, %v151
    %s153 = scalar_lea.vmem [#allocation2], 72
    %v154 = vld [vmem:[%s153] sm:$0xf]
    %v155 = vld [vmem:[%s153 + $0x4] sm:$0xf]
    %v156 = vld [vmem:[%s153 + $0x8] sm:$0xf]
    %v157 = vld [vmem:[%s153 + $0xc] sm:$0xf]
    %v158 = vld [vmem:[%s153 + $0x10] sm:$0xf]
    %v159 = vld [vmem:[%s153 + $0x14] sm:$0xf]
    %v160 = vld [vmem:[%s153 + $0x18] sm:$0xf]
    %v161 = vld [vmem:[%s153 + $0x1c] sm:$0xf]
    %v162 = vld [vmem:[%s153 + $0x20] sm:$0xf]
    %v163 = vld [vmem:[%s153 + $0x24] sm:$0xf]
    %v164 = vld [vmem:[%s153 + $0x28] sm:$0xf]
    %v165 = vld [vmem:[%s153 + $0x2c] sm:$0xf]
    %v166 = vld [vmem:[%s153 + $0x30] sm:$0xf]
    %v167 = vld [vmem:[%s153 + $0x34] sm:$0xf]
    %v168 = vld [vmem:[%s153 + $0x38] sm:$0xf]
    %v169 = vld [vmem:[%s153 + $0x3c] sm:$0xf]
    %v170 = vld [vmem:[%s153 + $0x40] sm:$0xf]
    %v171 = vld [vmem:[%s153 + $0x44] sm:$0xf]
    %v172 = vunpack.c.l.b16 %v118
    %v173 = vunpack.c.h.b16 %v118
    %v174 = vunpack.c.l.b16 %v128
    %v175 = vunpack.c.h.b16 %v128
    %v176 = vunpack.c.l.b16 %v142
    %v177 = vunpack.c.h.b16 %v142
    %v178 = vunpack.c.l.b16 %v152
    %v179 = vunpack.c.h.b16 %v152
    %v180 = vpack.c.b16 %v174, %v172
    %v181 = vpack.c.b16 %v175, %v173
    %v182 = vpack.c.b16 %v178, %v176
    %v183 = vpack.c.b16 %v179, %v177
    %v204 = vunpack.c.l.b16 %v154
    %v205 = vunpack.c.l.b16 %v155
    %v206 = vunpack.c.l.b16 %v156
    %v207 = vunpack.c.l.b16 %v157
    %v208 = vunpack.c.l.b16 %v158
    %v209 = vunpack.c.l.b16 %v159
    %v210 = vunpack.c.l.b16 %v160
    %v211 = vunpack.c.l.b16 %v161
    %v212 = vunpack.c.l.b16 %v162
    %v213 = vunpack.c.l.b16 %v163
    %v214 = vunpack.c.l.b16 %v164
    %v215 = vunpack.c.l.b16 %v165
    %v216 = vunpack.c.l.b16 %v166
    %v217 = vunpack.c.l.b16 %v167
    %v218 = vunpack.c.l.b16 %v168
    %v219 = vunpack.c.l.b16 %v169
    %v220 = vunpack.c.l.b16 %v170
    %v221 = vunpack.c.l.b16 %v171
    %v222 = vpack.c.b16 %v205, %v204
    %v223 = vpack.c.b16 %v207, %v206
    %v224 = vpack.c.b16 %v209, %v208
    %v225 = vpack.c.b16 %v211, %v210
    %v226 = vpack.c.b16 %v213, %v212
    %v227 = vpack.c.b16 %v215, %v214
    %v228 = vpack.c.b16 %v217, %v216
    %v229 = vpack.c.b16 %v219, %v218
    %v230 = vpack.c.b16 %v221, %v220
    %vm240 = vcmask 130048
    %v242 = vsel %vm240, %v181, 0
    %v245 = vsel %vm240, %v183, 0
    %247 = vmatpush.bf16.msra.mxu0 %v229
    %248 = vmatpush.bf16.msra.mxu0 %v228
    %249 = vmatpush.bf16.msra.mxu0 %v227
    %250 = vmatpush.bf16.msra.mxu0 %v226
    %251 = vmatpush.bf16.msra.mxu0 %v225
    %252 = vmatpush.bf16.msra.mxu0 %v224
    %253 = vmatpush.bf16.msra.mxu0 %v223
    %254 = vmatpush.bf16.msra.mxu0 %v222
    %255 = vmatmul.bf16.gmra.mxu0 %v180
    %v256 = vpop.f32.mrf.mxu0
    %v257 = vadd.f32 0.0, %v256
    %v258 = vpop.f32.mrf.mxu0
    %v259 = vadd.f32 0.0, %v258
    %260 = vmatmul.bf16.gmra.mxu0 %v182
    %v261 = vpop.f32.mrf.mxu0
    %v262 = vadd.f32 0.0, %v261
    %v263 = vpop.f32.mrf.mxu0
    %v264 = vadd.f32 0.0, %v263
    %265 = vdwg.mxu0
    %266 = vmatpush.bf16.msra.mxu0 0
    %267 = vmatpush.bf16.msra.mxu0 0
    %268 = vmatpush.bf16.msra.mxu0 0
    %269 = vmatpush.bf16.msra.mxu0 0
    %270 = vmatpush.bf16.msra.mxu0 0
    %271 = vmatpush.bf16.msra.mxu0 0
    %272 = vmatpush.bf16.msra.mxu0 0
    %273 = vmatpush.bf16.msra.mxu0 %v230
    %274 = vmatmul.bf16.gmra.mxu0 %v242
    %v275 = vpop.f32.mrf.mxu0
    %v276 = vadd.f32 %v257, %v275
    %v277 = vpop.f32.mrf.mxu0
    %v278 = vadd.f32 %v259, %v277
    %279 = vmatmul.bf16.gmra.mxu0 %v245
    %v280 = vpop.f32.mrf.mxu0
    %v281 = vadd.f32 %v262, %v280
    %v282 = vpop.f32.mrf.mxu0
    %v283 = vadd.f32 %v264, %v282
    %284 = vdwg.mxu0
    %v289 = vunpack.c.l.b16 %v78
    %v290 = vunpack.c.h.b16 %v78
    %v291 = vunpack.c.l.b16 %v79
    %v292 = vunpack.c.h.b16 %v79
    %v293 = vunpack.c.l.b16 %v80
    %v294 = vunpack.c.h.b16 %v80
    %v295 = vunpack.c.l.b16 %v81
    %v296 = vunpack.c.h.b16 %v81
    %v297 = vpack.c.b16 %v291, %v289
    %v298 = vpack.c.b16 %v292, %v290
    %v299 = vpack.c.b16 %v295, %v293
    %v300 = vpack.c.b16 %v296, %v294
    %v321 = vunpack.c.l.b16 %v82
    %v322 = vunpack.c.l.b16 %v83
    %v323 = vunpack.c.l.b16 %v84
    %v324 = vunpack.c.l.b16 %v85
    %v325 = vunpack.c.l.b16 %v86
    %v326 = vunpack.c.l.b16 %v87
    %v327 = vunpack.c.l.b16 %v88
    %v328 = vunpack.c.l.b16 %v89
    %v329 = vunpack.c.l.b16 %v90
    %v330 = vunpack.c.l.b16 %v91
    %v331 = vunpack.c.l.b16 %v92
    %v332 = vunpack.c.l.b16 %v93
    %v333 = vunpack.c.l.b16 %v94
    %v334 = vunpack.c.l.b16 %v95
    %v335 = vunpack.c.l.b16 %v96
    %v336 = vunpack.c.l.b16 %v97
    %v337 = vunpack.c.l.b16 %v98
    %v338 = vunpack.c.l.b16 %v99
    %v339 = vpack.c.b16 %v322, %v321
    %v340 = vpack.c.b16 %v324, %v323
    %v341 = vpack.c.b16 %v326, %v325
    %v342 = vpack.c.b16 %v328, %v327
    %v343 = vpack.c.b16 %v330, %v329
    %v344 = vpack.c.b16 %v332, %v331
    %v345 = vpack.c.b16 %v334, %v333
    %v346 = vpack.c.b16 %v336, %v335
    %v347 = vpack.c.b16 %v338, %v337
    %v358 = vsel %vm240, %v298, 0
    %v361 = vsel %vm240, %v300, 0
    %363 = vmatpush.bf16.msra.mxu0 %v346
    %364 = vmatpush.bf16.msra.mxu0 %v345
    %365 = vmatpush.bf16.msra.mxu0 %v344
    %366 = vmatpush.bf16.msra.mxu0 %v343
    %367 = vmatpush.bf16.msra.mxu0 %v342
    %368 = vmatpush.bf16.msra.mxu0 %v341
    %369 = vmatpush.bf16.msra.mxu0 %v340
    %370 = vmatpush.bf16.msra.mxu0 %v339
    %371 = vmatmul.bf16.gmra.mxu0 %v297
    %v372 = vpop.f32.mrf.mxu0
    %v373 = vadd.f32 %v276, %v372
    %v374 = vpop.f32.mrf.mxu0
    %v375 = vadd.f32 %v278, %v374
    %376 = vmatmul.bf16.gmra.mxu0 %v299
    %v377 = vpop.f32.mrf.mxu0
    %v378 = vadd.f32 %v281, %v377
    %v379 = vpop.f32.mrf.mxu0
    %v380 = vadd.f32 %v283, %v379
    %381 = vdwg.mxu0
    %382 = vmatpush.bf16.msra.mxu0 0
    %383 = vmatpush.bf16.msra.mxu0 0
    %384 = vmatpush.bf16.msra.mxu0 0
    %385 = vmatpush.bf16.msra.mxu0 0
    %386 = vmatpush.bf16.msra.mxu0 0
    %387 = vmatpush.bf16.msra.mxu0 0
    %388 = vmatpush.bf16.msra.mxu0 0
    %389 = vmatpush.bf16.msra.mxu0 %v347
    %390 = vmatmul.bf16.gmra.mxu0 %v358
    %v391 = vpop.f32.mrf.mxu0
    %v392 = vadd.f32 %v373, %v391
    %v393 = vpop.f32.mrf.mxu0
    %v394 = vadd.f32 %v375, %v393
    %395 = vmatmul.bf16.gmra.mxu0 %v361
    %v396 = vpop.f32.mrf.mxu0
    %v397 = vadd.f32 %v378, %v396
    %v398 = vpop.f32.mrf.mxu0
    %v399 = vadd.f32 %v380, %v398
    %400 = vdwg.mxu0
    %v401 = vld [vmem:[%s0] sm:$0xee]
    %v402 = vld [vmem:[%s0 + $0x18] sm:$0xee]
    %vm407 = vcmask 1042432
    %vm408 = vcmask 1046532
    %vm409 = vmor %vm407, %vm408
    %v410 = vrot.slane %v401, 5
    %v411 = vrot.slane %v410, 4
    %v412 = vrot.slane %v79, 5
    %v413 = vsel %vm409, %v411, %v412
    %v414 = vrot.slane %v412, 4
    %v415 = vrot.slane %v100, 5
    %v416 = vsel %vm409, %v414, %v415
    %v417 = vrot.slane %v402, 5
    %v418 = vrot.slane %v417, 4
    %v419 = vrot.slane %v81, 5
    %v420 = vsel %vm409, %v418, %v419
    %v421 = vrot.slane %v419, 4
    %v422 = vrot.slane %v101, 5
    %v423 = vsel %vm409, %v421, %v422
    %s424 = scalar_lea.vmem [#allocation2], 144
    %v425 = vld [vmem:[%s424] sm:$0xf]
    %v426 = vld [vmem:[%s424 + $0x4] sm:$0xf]
    %v427 = vld [vmem:[%s424 + $0x8] sm:$0xf]
    %v428 = vld [vmem:[%s424 + $0xc] sm:$0xf]
    %v429 = vld [vmem:[%s424 + $0x10] sm:$0xf]
    %v430 = vld [vmem:[%s424 + $0x14] sm:$0xf]
    %v431 = vld [vmem:[%s424 + $0x18] sm:$0xf]
    %v432 = vld [vmem:[%s424 + $0x1c] sm:$0xf]
    %v433 = vld [vmem:[%s424 + $0x20] sm:$0xf]
    %v434 = vld [vmem:[%s424 + $0x24] sm:$0xf]
    %v435 = vld [vmem:[%s424 + $0x28] sm:$0xf]
    %v436 = vld [vmem:[%s424 + $0x2c] sm:$0xf]
    %v437 = vld [vmem:[%s424 + $0x30] sm:$0xf]
    %v438 = vld [vmem:[%s424 + $0x34] sm:$0xf]
    %v439 = vld [vmem:[%s424 + $0x38] sm:$0xf]
    %v440 = vld [vmem:[%s424 + $0x3c] sm:$0xf]
    %v441 = vld [vmem:[%s424 + $0x40] sm:$0xf]
    %v442 = vld [vmem:[%s424 + $0x44] sm:$0xf]
    %v443 = vunpack.c.l.b16 %v413
    %v444 = vunpack.c.h.b16 %v413
    %v445 = vunpack.c.l.b16 %v416
    %v446 = vunpack.c.h.b16 %v416
    %v447 = vunpack.c.l.b16 %v420
    %v448 = vunpack.c.h.b16 %v420
    %v449 = vunpack.c.l.b16 %v423
    %v450 = vunpack.c.h.b16 %v423
    %v451 = vpack.c.b16 %v445, %v443
    %v452 = vpack.c.b16 %v446, %v444
    %v453 = vpack.c.b16 %v449, %v447
    %v454 = vpack.c.b16 %v450, %v448
    %v475 = vunpack.c.l.b16 %v425
    %v476 = vunpack.c.l.b16 %v426
    %v477 = vunpack.c.l.b16 %v427
    %v478 = vunpack.c.l.b16 %v428
    %v479 = vunpack.c.l.b16 %v429
    %v480 = vunpack.c.l.b16 %v430
    %v481 = vunpack.c.l.b16 %v431
    %v482 = vunpack.c.l.b16 %v432
    %v483 = vunpack.c.l.b16 %v433
    %v484 = vunpack.c.l.b16 %v434
    %v485 = vunpack.c.l.b16 %v435
    %v486 = vunpack.c.l.b16 %v436
    %v487 = vunpack.c.l.b16 %v437
    %v488 = vunpack.c.l.b16 %v438
    %v489 = vunpack.c.l.b16 %v439
    %v490 = vunpack.c.l.b16 %v440
    %v491 = vunpack.c.l.b16 %v441
    %v492 = vunpack.c.l.b16 %v442
    %v493 = vpack.c.b16 %v476, %v475
    %v494 = vpack.c.b16 %v478, %v477
    %v495 = vpack.c.b16 %v480, %v479
    %v496 = vpack.c.b16 %v482, %v481
    %v497 = vpack.c.b16 %v484, %v483
    %v498 = vpack.c.b16 %v486, %v485
    %v499 = vpack.c.b16 %v488, %v487
    %v500 = vpack.c.b16 %v490, %v489
    %v501 = vpack.c.b16 %v492, %v491
    %v512 = vsel %vm240, %v452, 0
    %v515 = vsel %vm240, %v454, 0
    %517 = vmatpush.bf16.msra.mxu0 %v500
    %518 = vmatpush.bf16.msra.mxu0 %v499
    %519 = vmatpush.bf16.msra.mxu0 %v498
    %520 = vmatpush.bf16.msra.mxu0 %v497
    %521 = vmatpush.bf16.msra.mxu0 %v496
    %522 = vmatpush.bf16.msra.mxu0 %v495
    %523 = vmatpush.bf16.msra.mxu0 %v494
    %524 = vmatpush.bf16.msra.mxu0 %v493
    %525 = vmatmul.bf16.gmra.mxu0 %v451
    %v526 = vpop.f32.mrf.mxu0
    %v527 = vadd.f32 0.0, %v526
    %v528 = vpop.f32.mrf.mxu0
    %v529 = vadd.f32 0.0, %v528
    %530 = vmatmul.bf16.gmra.mxu0 %v453
    %v531 = vpop.f32.mrf.mxu0
    %v532 = vadd.f32 0.0, %v531
    %v533 = vpop.f32.mrf.mxu0
    %v534 = vadd.f32 0.0, %v533
    %535 = vdwg.mxu0
    %536 = vmatpush.bf16.msra.mxu0 0
    %537 = vmatpush.bf16.msra.mxu0 0
    %538 = vmatpush.bf16.msra.mxu0 0
    %539 = vmatpush.bf16.msra.mxu0 0
    %540 = vmatpush.bf16.msra.mxu0 0
    %541 = vmatpush.bf16.msra.mxu0 0
    %542 = vmatpush.bf16.msra.mxu0 0
    %543 = vmatpush.bf16.msra.mxu0 %v501
    %544 = vmatmul.bf16.gmra.mxu0 %v512
    %v545 = vpop.f32.mrf.mxu0
    %v546 = vadd.f32 %v527, %v545
    %v547 = vpop.f32.mrf.mxu0
    %v548 = vadd.f32 %v529, %v547
    %549 = vmatmul.bf16.gmra.mxu0 %v515
    %v550 = vpop.f32.mrf.mxu0
    %v551 = vadd.f32 %v532, %v550
    %v552 = vpop.f32.mrf.mxu0
    %v553 = vadd.f32 %v534, %v552
    %554 = vdwg.mxu0
    %v555 = vadd.f32 %v392, %v546
    %v556 = vadd.f32 %v394, %v548
    %v557 = vadd.f32 %v397, %v551
    %v558 = vadd.f32 %v399, %v553
    %v559 = vld [vmem:[%s2] sm:$0x1]
    %v561 = vperm.slane %v559, 0
    %v563 = vadd.f32 %v555, %v561
    %v564 = vadd.f32 %v556, %v561
    %v565 = vadd.f32 %v557, %v561
    %v566 = vadd.f32 %v558, %v561
    %v567 = vmax.f32 %v563, 0.0
    %v568 = vmax.f32 %v564, 0.0
    %v569 = vmax.f32 %v565, 0.0
    %v570 = vmax.f32 %v566, 0.0
    %v571 = vpack.c.bf16 %v568, %v567
    %v572 = vpack.c.bf16 %v570, %v569
    %v573 = vld [vmem:[#allocation5] sm:$0xff]
    %v574 = vld [vmem:[#allocation5 + $0x8] sm:$0xff]
    %v575 = vld [vmem:[#allocation5 + $0x10] sm:$0xff]
    %v576 = vld [vmem:[#allocation5 + $0x18] sm:$0xff]
    %v577 = vld [vmem:[#allocation5 + $0x20] sm:$0xff]
    %v578 = vld [vmem:[#allocation5 + $0x28] sm:$0xff]
    %v579 = vld [vmem:[#allocation5 + $0x30] sm:$0xff]
    %v580 = vld [vmem:[#allocation5 + $0x38] sm:$0xff]
    %v581 = vld [vmem:[#allocation5 + $0x40] sm:$0xff]
    %v582 = vld [vmem:[#allocation5 + $0x48] sm:$0xff]
    %v583 = vld [vmem:[#allocation5 + $0x50] sm:$0xff]
    %v584 = vld [vmem:[#allocation5 + $0x58] sm:$0xff]
    %v585 = vld [vmem:[#allocation5 + $0x60] sm:$0xff]
    %v586 = vld [vmem:[#allocation5 + $0x68] sm:$0xff]
    %v587 = vld [vmem:[#allocation5 + $0x70] sm:$0xff]
    %v588 = vld [vmem:[#allocation5 + $0x78] sm:$0xff]
    %v589 = vld [vmem:[%s4] sm:$0x3]
    %v591 = vperm.slane %v589, 0
    %v592 = vperm.slane %v589, 1
    %v611 = vunpack.c.l.b16 %v573
    %v612 = vunpack.c.h.b16 %v573
    %v613 = vunpack.c.l.b16 %v574
    %v614 = vunpack.c.h.b16 %v574
    %v615 = vunpack.c.l.b16 %v575
    %v616 = vunpack.c.h.b16 %v575
    %v617 = vunpack.c.l.b16 %v576
    %v618 = vunpack.c.h.b16 %v576
    %v619 = vunpack.c.l.b16 %v577
    %v620 = vunpack.c.h.b16 %v577
    %v621 = vunpack.c.l.b16 %v578
    %v622 = vunpack.c.h.b16 %v578
    %v623 = vunpack.c.l.b16 %v579
    %v624 = vunpack.c.h.b16 %v579
    %v625 = vunpack.c.l.b16 %v580
    %v626 = vunpack.c.h.b16 %v580
    %v627 = vunpack.c.l.b16 %v581
    %v628 = vunpack.c.h.b16 %v581
    %v629 = vunpack.c.l.b16 %v582
    %v630 = vunpack.c.h.b16 %v582
    %v631 = vunpack.c.l.b16 %v583
    %v632 = vunpack.c.h.b16 %v583
    %v633 = vunpack.c.l.b16 %v584
    %v634 = vunpack.c.h.b16 %v584
    %v635 = vunpack.c.l.b16 %v585
    %v636 = vunpack.c.h.b16 %v585
    %v637 = vunpack.c.l.b16 %v586
    %v638 = vunpack.c.h.b16 %v586
    %v639 = vunpack.c.l.b16 %v587
    %v640 = vunpack.c.h.b16 %v587
    %v641 = vunpack.c.l.b16 %v588
    %v642 = vunpack.c.h.b16 %v588
    %v643 = vpack.c.b16 %v613, %v611
    %v644 = vpack.c.b16 %v614, %v612
    %v645 = vpack.c.b16 %v617, %v615
    %v646 = vpack.c.b16 %v618, %v616
    %v647 = vpack.c.b16 %v621, %v619
    %v648 = vpack.c.b16 %v622, %v620
    %v649 = vpack.c.b16 %v625, %v623
    %v650 = vpack.c.b16 %v626, %v624
    %v651 = vpack.c.b16 %v629, %v627
    %v652 = vpack.c.b16 %v630, %v628
    %v653 = vpack.c.b16 %v633, %v631
    %v654 = vpack.c.b16 %v634, %v632
    %v655 = vpack.c.b16 %v637, %v635
    %v656 = vpack.c.b16 %v638, %v636
    %v657 = vpack.c.b16 %v641, %v639
    %v658 = vpack.c.b16 %v642, %v640
    %675 = vmatpush.bf16.msra.mxu0 %v657
    %676 = vmatpush.bf16.msra.mxu0 %v655
    %677 = vmatpush.bf16.msra.mxu0 %v653
    %678 = vmatpush.bf16.msra.mxu0 %v651
    %679 = vmatpush.bf16.msra.mxu0 %v649
    %680 = vmatpush.bf16.msra.mxu0 %v647
    %681 = vmatpush.bf16.msra.mxu0 %v645
    %682 = vmatpush.bf16.msra.mxu0 %v643
    %683 = vmatmul.bf16.gmra.mxu0 %v571
    %v684 = vpop.f32.mrf.mxu0
    %v685 = vadd.f32 %v591, %v684
    %v686 = vpop.f32.mrf.mxu0
    %v687 = vadd.f32 %v591, %v686
    %688 = vmatmul.bf16.gmra.mxu0 %v572
    %v689 = vpop.f32.mrf.mxu0
    %v690 = vadd.f32 %v591, %v689
    %v691 = vpop.f32.mrf.mxu0
    %v692 = vadd.f32 %v591, %v691
    %693 = vdwg.mxu0
    %694 = vmatpush.bf16.msra.mxu0 %v658
    %695 = vmatpush.bf16.msra.mxu0 %v656
    %696 = vmatpush.bf16.msra.mxu0 %v654
    %697 = vmatpush.bf16.msra.mxu0 %v652
    %698 = vmatpush.bf16.msra.mxu0 %v650
    %699 = vmatpush.bf16.msra.mxu0 %v648
    %700 = vmatpush.bf16.msra.mxu0 %v646
    %701 = vmatpush.bf16.msra.mxu0 %v644
    %702 = vmatmul.bf16.gmra.mxu0 %v571
    %v703 = vpop.f32.mrf.mxu0
    %v704 = vadd.f32 %v592, %v703
    %v705 = vpop.f32.mrf.mxu0
    %v706 = vadd.f32 %v592, %v705
    %707 = vmatmul.bf16.gmra.mxu0 %v572
    %v708 = vpop.f32.mrf.mxu0
    %v709 = vadd.f32 %v592, %v708
    %v710 = vpop.f32.mrf.mxu0
    %v711 = vadd.f32 %v592, %v710
    %712 = vdwg.mxu0
    %v713 = vmax.f32 %v685, 0.0
    %v714 = vmax.f32 %v704, 0.0
    %v715 = vmax.f32 %v687, 0.0
    %v716 = vmax.f32 %v706, 0.0
    %v717 = vmax.f32 %v690, 0.0
    %v718 = vmax.f32 %v709, 0.0
    %v719 = vmax.f32 %v692, 0.0
    %v720 = vmax.f32 %v711, 0.0
    %v721 = vld [vmem:[%s7] sm:$0xf]
    %v722 = vld [vmem:[%s7 + $0x4] sm:$0xf]
    %v723 = vld [vmem:[%s5] sm:$0xf]
    %v724 = vld [vmem:[%s5 + $0x4] sm:$0xf]
    %v725 = vld [vmem:[%s5 + $0x8] sm:$0xf]
    %v726 = vld [vmem:[%s5 + $0xc] sm:$0xf]
    %v731 = vunpack.c.l.b16 %v723
    %v732 = vunpack.c.l.b16 %v724
    %v733 = vunpack.c.l.b16 %v725
    %v734 = vunpack.c.l.b16 %v726
    %v735 = vpack.c.b16 %v732, %v731
    %v736 = vpack.c.b16 %v734, %v733
    %v739 = vunpack.c.l.b16 %v721
    %v740 = vunpack.c.l.b16 %v722
    %v741 = vpack.c.b16 %v740, %v739
    %v744 = vsel %vm240, %v735, 0
    %v747 = vsel %vm240, %v736, 0
    %749 = vmatpush.bf16.msra.mxu0 0
    %750 = vmatpush.bf16.msra.mxu0 0
    %751 = vmatpush.bf16.msra.mxu0 0
    %752 = vmatpush.bf16.msra.mxu0 0
    %753 = vmatpush.bf16.msra.mxu0 0
    %754 = vmatpush.bf16.msra.mxu0 0
    %755 = vmatpush.bf16.msra.mxu0 0
    %756 = vmatpush.bf16.msra.mxu0 %v741
    %757 = vmatmul.bf16.gmra.mxu0 %v744
    %v758 = vpop.f32.mrf.mxu0
    %v759 = vadd.f32 0.0, %v758
    %v760 = vpop.f32.mrf.mxu0
    %v761 = vadd.f32 0.0, %v760
    %762 = vmatmul.bf16.gmra.mxu0 %v747
    %v763 = vpop.f32.mrf.mxu0
    %v764 = vadd.f32 0.0, %v763
    %v765 = vpop.f32.mrf.mxu0
    %v766 = vadd.f32 0.0, %v765
    %767 = vdwg.mxu0
    %v768 = vpack.c.bf16 %v761, %v759
    %v769 = vpack.c.bf16 %v766, %v764
    %v770 = vld [vmem:[#allocation7] sm:$0xff]
    %v771 = vld [vmem:[#allocation7 + $0x8] sm:$0xff]
    %v772 = vld [vmem:[#allocation7 + $0x10] sm:$0xff]
    %v773 = vld [vmem:[#allocation7 + $0x18] sm:$0xff]
    %v774 = vld [vmem:[#allocation7 + $0x20] sm:$0xff]
    %v775 = vld [vmem:[#allocation7 + $0x28] sm:$0xff]
    %v776 = vld [vmem:[#allocation7 + $0x30] sm:$0xff]
    %v777 = vld [vmem:[#allocation7 + $0x38] sm:$0xff]
    %v778 = vld [vmem:[#allocation7 + $0x40] sm:$0xff]
    %v779 = vld [vmem:[#allocation7 + $0x48] sm:$0xff]
    %v780 = vld [vmem:[#allocation7 + $0x50] sm:$0xff]
    %v781 = vld [vmem:[#allocation7 + $0x58] sm:$0xff]
    %v782 = vld [vmem:[#allocation7 + $0x60] sm:$0xff]
    %v783 = vld [vmem:[#allocation7 + $0x68] sm:$0xff]
    %v784 = vld [vmem:[#allocation7 + $0x70] sm:$0xff]
    %v785 = vld [vmem:[#allocation7 + $0x78] sm:$0xff]
    %v802 = vunpack.c.l.b16 %v770
    %v803 = vunpack.c.h.b16 %v770
    %v804 = vunpack.c.l.b16 %v771
    %v805 = vunpack.c.h.b16 %v771
    %v806 = vunpack.c.l.b16 %v772
    %v807 = vunpack.c.h.b16 %v772
    %v808 = vunpack.c.l.b16 %v773
    %v809 = vunpack.c.h.b16 %v773
    %v810 = vunpack.c.l.b16 %v774
    %v811 = vunpack.c.h.b16 %v774
    %v812 = vunpack.c.l.b16 %v775
    %v813 = vunpack.c.h.b16 %v775
    %v814 = vunpack.c.l.b16 %v776
    %v815 = vunpack.c.h.b16 %v776
    %v816 = vunpack.c.l.b16 %v777
    %v817 = vunpack.c.h.b16 %v777
    %v818 = vunpack.c.l.b16 %v778
    %v819 = vunpack.c.h.b16 %v778
    %v820 = vunpack.c.l.b16 %v779
    %v821 = vunpack.c.h.b16 %v779
    %v822 = vunpack.c.l.b16 %v780
    %v823 = vunpack.c.h.b16 %v780
    %v824 = vunpack.c.l.b16 %v781
    %v825 = vunpack.c.h.b16 %v781
    %v826 = vunpack.c.l.b16 %v782
    %v827 = vunpack.c.h.b16 %v782
    %v828 = vunpack.c.l.b16 %v783
    %v829 = vunpack.c.h.b16 %v783
    %v830 = vunpack.c.l.b16 %v784
    %v831 = vunpack.c.h.b16 %v784
    %v832 = vunpack.c.l.b16 %v785
    %v833 = vunpack.c.h.b16 %v785
    %v834 = vpack.c.b16 %v804, %v802
    %v835 = vpack.c.b16 %v805, %v803
    %v836 = vpack.c.b16 %v808, %v806
    %v837 = vpack.c.b16 %v809, %v807
    %v838 = vpack.c.b16 %v812, %v810
    %v839 = vpack.c.b16 %v813, %v811
    %v840 = vpack.c.b16 %v816, %v814
    %v841 = vpack.c.b16 %v817, %v815
    %v842 = vpack.c.b16 %v820, %v818
    %v843 = vpack.c.b16 %v821, %v819
    %v844 = vpack.c.b16 %v824, %v822
    %v845 = vpack.c.b16 %v825, %v823
    %v846 = vpack.c.b16 %v828, %v826
    %v847 = vpack.c.b16 %v829, %v827
    %v848 = vpack.c.b16 %v832, %v830
    %v849 = vpack.c.b16 %v833, %v831
    %866 = vmatpush.bf16.msra.mxu0 %v848
    %867 = vmatpush.bf16.msra.mxu0 %v846
    %868 = vmatpush.bf16.msra.mxu0 %v844
    %869 = vmatpush.bf16.msra.mxu0 %v842
    %870 = vmatpush.bf16.msra.mxu0 %v840
    %871 = vmatpush.bf16.msra.mxu0 %v838
    %872 = vmatpush.bf16.msra.mxu0 %v836
    %873 = vmatpush.bf16.msra.mxu0 %v834
    %874 = vmatmul.bf16.gmra.mxu0 %v768
    %v875 = vpop.f32.mrf.mxu0
    %v876 = vadd.f32 0.0, %v875
    %v877 = vpop.f32.mrf.mxu0
    %v878 = vadd.f32 0.0, %v877
    %879 = vmatmul.bf16.gmra.mxu0 %v769
    %v880 = vpop.f32.mrf.mxu0
    %v881 = vadd.f32 0.0, %v880
    %v882 = vpop.f32.mrf.mxu0
    %v883 = vadd.f32 0.0, %v882
    %884 = vdwg.mxu0
    %885 = vmatpush.bf16.msra.mxu0 %v849
    %886 = vmatpush.bf16.msra.mxu0 %v847
    %887 = vmatpush.bf16.msra.mxu0 %v845
    %888 = vmatpush.bf16.msra.mxu0 %v843
    %889 = vmatpush.bf16.msra.mxu0 %v841
    %890 = vmatpush.bf16.msra.mxu0 %v839
    %891 = vmatpush.bf16.msra.mxu0 %v837
    %892 = vmatpush.bf16.msra.mxu0 %v835
    %893 = vmatmul.bf16.gmra.mxu0 %v768
    %v894 = vpop.f32.mrf.mxu0
    %v895 = vadd.f32 0.0, %v894
    %v896 = vpop.f32.mrf.mxu0
    %v897 = vadd.f32 0.0, %v896
    %898 = vmatmul.bf16.gmra.mxu0 %v769
    %v899 = vpop.f32.mrf.mxu0
    %v900 = vadd.f32 0.0, %v899
    %v901 = vpop.f32.mrf.mxu0
    %v902 = vadd.f32 0.0, %v901
    %903 = vdwg.mxu0
    %v904 = vadd.f32 %v713, %v876
    %v905 = vadd.f32 %v714, %v895
    %v906 = vadd.f32 %v715, %v878
    %v907 = vadd.f32 %v716, %v897
    %v908 = vadd.f32 %v717, %v881
    %v909 = vadd.f32 %v718, %v900
    %v910 = vadd.f32 %v719, %v883
    %v911 = vadd.f32 %v720, %v902
    %912 = vst [vmem:[#allocation8] sm:$0xff] %v904
    %913 = vst [vmem:[#allocation8 + $0x8] sm:$0xff] %v905
    %914 = vst [vmem:[#allocation8 + $0x10] sm:$0xff] %v906
    %915 = vst [vmem:[#allocation8 + $0x18] sm:$0xff] %v907
    %916 = vst [vmem:[#allocation8 + $0x20] sm:$0xff] %v908
    %917 = vst [vmem:[#allocation8 + $0x28] sm:$0xff] %v909
    %918 = vst [vmem:[#allocation8 + $0x30] sm:$0xff] %v910
    %919 = vst [vmem:[#allocation8 + $0x38] sm:$0xff] %v911
    // Predicated region
    $region46: #{tpu_custom_call.1} parent=1 // pred_check
      _
    $region47: #{tpu_custom_call.1} parent=1 // pred_check_branch
      %921 = sbr.rel (0) target = $region49
    $region48: #{tpu_custom_call.1} parent=1 // pred_region
      %923 = vsyncadd [#allocation4], 0
      %s924 = sshll.u32 [#allocation8], 4
      %s925 = int_to_ptr.vmem [resolvable:$true] %s924
      %s926 = sshll.u32 %s8, 4
      %s927 = int_to_ptr.hbm [resolvable:$true] %s926
      %932 = dma.vmem_to_hbm [thread:$0]  %s925, 1024, %s927, [#allocation4], 256, 256, 16
    $region49: #{tpu_custom_call.1} parent=1 // pred_fallthru
      _
    // Predicated region
    $region50: #{tpu_custom_call.1} parent=1 // pred_check
      _
    $region51: #{tpu_custom_call.1} parent=1 // pred_check_branch
      %934 = sbr.rel (0) target = $region53
    $region52: #{tpu_custom_call.1} parent=1 // pred_region
      %936 = dma.done [#allocation4], 1024
    $region53: #{tpu_custom_call.1} parent=1 // pred_fallthru
      _
    %937 = vsyncpa [#allocation3], 1
    %938 = vsyncpa [#allocation6], 1
    %939 = vsyncpa [#allocation4], 1

</llo_original>
